<compile_context>
chip_gen: v7x
topology: tpu7x:2x2x1
jax: 0.10.0
libtpu: 0.0.40
codegen_flags: <defaults>
</compile_context>

<pallas_src>
import functools
import math

import jax
import jax.numpy as jnp
from jax import lax
from jax.experimental import pallas as pl
from jax.experimental.pallas import tpu as pltpu


def _block_diag(w, p):
    if p == 1:
        return w
    return jax.scipy.linalg.block_diag(*([w] * p))


def _prenorm_residual_kernel(x_ref, m_ref, w1_ref, b1_ref, w2_ref, b2_ref, o_ref,
                             *, inv_d, eps):
    """One (tm, L) lane-packed tile: LayerNorm -> Linear -> GELU -> Linear -> +residual."""
    x = x_ref[...].astype(jnp.float32)            # (tm, L), L = P*D lane-dense
    m = m_ref[...]                                # (L, L) block-diagonal ones (f32)

    # --- LayerNorm over each D-channel lane group (eps = 1e-5) ---
    # Single f32 matmul with the segment-ones matrix both sums each 32-lane
    # group and broadcasts that sum back to every lane of the group, so all
    # elementwise work stays 128-lane dense. Single-pass var = E[x^2] - mean^2
    # (fine for normalized activations; can cancel if |mean| >> std).
    s = jnp.dot(x, m, preferred_element_type=jnp.float32)
    s2 = jnp.dot(x * x, m, preferred_element_type=jnp.float32)
    mu = s * jnp.float32(inv_d)
    var = s2 * jnp.float32(inv_d) - mu * mu
    xn = (x - mu) * lax.rsqrt(var + jnp.float32(eps))

    # --- Linear 1 (gamma/beta already folded in wrapper-side); bf16 MXU, f32 acc ---
    h = jnp.dot(xn.astype(jnp.bfloat16), w1_ref[...],
                preferred_element_type=jnp.float32) + b1_ref[...]

    # --- GELU: tanh approximation runs on the EUP (separate VLIW slot) ---
    h = jax.nn.gelu(h, approximate=True)

    # Dropout: identity at inference.

    # --- Linear 2: bf16 MXU operands, f32 accumulation ---
    y = jnp.dot(h.astype(jnp.bfloat16), w2_ref[...],
                preferred_element_type=jnp.float32) + b2_ref[...]

    # --- residual add in f32; fully lane-dense store ---
    o_ref[...] = (y + x).astype(o_ref.dtype)


def dim_prenorm_residual(x, gamma, beta, w1, b1, w2, b2, *, tm_packed=1024, eps=1e-5):
    """x: (B, S, D). Params: gamma/beta (D,), w1 (D, inner), b1 (inner,),
    w2 (inner, D), b2 (D,)."""
    B, S, D = x.shape
    inner = w1.shape[1]
    N = B * S

    # Lane packing factor: put P logical rows of D channels side by side so the
    # kernel's last dim fills a 128-lane vreg (D=32 -> P=4, L=128).
    P = (128 // D) if (D < 128 and 128 % D == 0) else 1
    L = P * D

    # Fold LayerNorm affine into the first linear layer (f32):
    #   (xn*gamma + beta) @ w1 + b1 == xn @ (gamma[:,None]*w1) + (beta @ w1 + b1)
    w1f = w1.astype(jnp.float32) * gamma.astype(jnp.float32)[:, None]
    b1f = beta.astype(jnp.float32) @ w1.astype(jnp.float32) + b1.astype(jnp.float32)

    # Block-diagonal weights keep the packed lane groups independent so both
    # matmuls present lane-dense K/N to the MXU; bf16 weights halve DMA/VMEM.
    w1_blk = _block_diag(w1f, P).astype(jnp.bfloat16)                       # (L, P*inner)
    w2_blk = _block_diag(w2.astype(jnp.float32), P).astype(jnp.bfloat16)    # (P*inner, L)
    b1_blk = jnp.tile(b1f, P).reshape(1, P * inner)
    b2_blk = jnp.tile(b2.astype(jnp.float32), P).reshape(1, L)

    # Segment-ones matrix: m[i, j] = 1 iff lanes i, j belong to the same channel group.
    grp = jnp.arange(L) // D
    m_seg = (grp[:, None] == grp[None, :]).astype(jnp.float32)              # (L, L)

    # Row tiling over packed rows with minimal padding.  No forced halving
    # (useless on single-TC v5e/v6e); when the data needs >1 block, use an even
    # block count so v7x's two TensorCores get balanced work.
    Npk = pl.cdiv(N, P)
    if Npk <= tm_packed:
        tm = Npk                        # single block == full array: no sublane constraint
        n_blocks = 1
    else:
        n_blocks = pl.cdiv(Npk, tm_packed)
        if n_blocks % 2:
            n_blocks += 1
        tm = ((pl.cdiv(Npk, n_blocks) + 7) // 8) * 8
        n_blocks = pl.cdiv(Npk, tm)
    Npk_pad = n_blocks * tm
    N_pad = Npk_pad * P

    xf = x.reshape(N, D)
    if N_pad != N:                      # at most P-1 (single block) / ~8P rows of padding
        xf = jnp.pad(xf, ((0, N_pad - N), (0, 0)))
    xp = xf.reshape(Npk_pad, L)         # contiguous reshape: free, lane-dense view

    kernel = functools.partial(_prenorm_residual_kernel, inv_d=1.0 / D, eps=eps)

    cost = pl.CostEstimate(
        flops=int(4 * N * D * inner + 4 * N * D * L),
        transcendentals=int(N * inner + N * D),
        bytes_accessed=int(2 * N * D * x.dtype.itemsize
                           + 2 * (L * P * inner) * 2 + L * L * 4),
    )

    out = pl.pallas_call(
        kernel,
        out_shape=jax.ShapeDtypeStruct((Npk_pad, L), x.dtype),
        grid=(n_blocks,),
        in_specs=[
            pl.BlockSpec((tm, L), lambda i: (i, 0)),          # x (lane-packed rows)
            pl.BlockSpec((L, L), lambda i: (0, 0)),           # segment-ones (f32)
            pl.BlockSpec((L, P * inner), lambda i: (0, 0)),   # W1 block-diag (bf16)
            pl.BlockSpec((1, P * inner), lambda i: (0, 0)),   # b1 (f32)
            pl.BlockSpec((P * inner, L), lambda i: (0, 0)),   # W2 block-diag (bf16)
            pl.BlockSpec((1, L), lambda i: (0, 0)),           # b2 (f32)
        ],
        out_specs=pl.BlockSpec((tm, L), lambda i: (i, 0)),
        compiler_params=pltpu.CompilerParams(
            dimension_semantics=("parallel",)),
        cost_estimate=cost,
    )(xp, m_seg, w1_blk, b1_blk, w2_blk, b2_blk)

    out = out.reshape(N_pad, D)
    if N_pad != N:
        out = out[:N]
    return out.reshape(B, S, D)


def reference(x, gamma, beta, w1, b1, w2, b2):
    """Faithful f32 reference: LayerNorm(eps=1e-5) + exact-erf GELU MLP + residual."""
    xf = x.astype(jnp.float32)
    mu = jnp.mean(xf, axis=-1, keepdims=True)
    var = jnp.mean((xf - mu) ** 2, axis=-1, keepdims=True)
    xn = (xf - mu) / jnp.sqrt(var + 1e-5) * gamma + beta
    h = xn @ w1 + b1
    h = 0.5 * h * (1.0 + lax.erf(h / math.sqrt(2.0)))
    y = h @ w2 + b2
    return (y + xf).astype(x.dtype)


if __name__ == "__main__":
    # Module config: dim=32, expansion_factor=4, dropout=0.0 (inference)
    dim = 32
    expansion_factor = 4
    inner = int(dim * expansion_factor)

    B, S = 2, 8
    key = jax.random.PRNGKey(0)
    kx, kw1, kb1, kw2, kb2 = jax.random.split(key, 5)

    x = jax.random.normal(kx, (B, S, dim), dtype=jnp.float32)

    # Parameter shapes match nn.LayerNorm(dim), nn.Linear(dim, inner), nn.Linear(inner, dim).
    gamma = jnp.ones((dim,), jnp.float32)
    beta = jnp.zeros((dim,), jnp.float32)
    lim1 = 1.0 / math.sqrt(dim)
    w1 = jax.random.uniform(kw1, (dim, inner), jnp.float32, -lim1, lim1)
    b1 = jax.random.uniform(kb1, (inner,), jnp.float32, -lim1, lim1)
    lim2 = 1.0 / math.sqrt(inner)
    w2 = jax.random.uniform(kw2, (inner, dim), jnp.float32, -lim2, lim2)
    b2 = jax.random.uniform(kb2, (dim,), jnp.float32, -lim2, lim2)

    out = dim_prenorm_residual(x, gamma, beta, w1, b1, w2, b2)
    out = jax.block_until_ready(out)

    ref = reference(x, gamma, beta, w1, b1, w2, b2)
    # bf16 MXU operands + tanh-approx GELU => slightly looser tolerance than the
    # exact f32/erf reference.
    err = jnp.max(jnp.abs(out - ref))
    assert jnp.allclose(out, ref, atol=2e-2, rtol=2e-2), f"mismatch vs reference, max abs err={err}"

    print("KERNEL_OK")
</pallas_src>

<mosaic_0001>
module attributes {stable_mosaic.version = 11 : i64} {
  func.func @_prenorm_residual_kernel(%arg0: i32, %arg1: memref<4x128xf32, #tpu.memory_space<vmem>>, %arg2: memref<128x128xf32, #tpu.memory_space<vmem>>, %arg3: memref<128x512xbf16, #tpu.memory_space<vmem>>, %arg4: memref<1x512xf32, #tpu.memory_space<vmem>>, %arg5: memref<512x128xbf16, #tpu.memory_space<vmem>>, %arg6: memref<1x128xf32, #tpu.memory_space<vmem>>, %arg7: memref<4x128xf32, #tpu.memory_space<vmem>>) attributes {dimension_semantics = [#tpu.dimension_semantics<parallel>], iteration_bounds = array<i64: 1>, scalar_prefetch = 0 : i64, scratch_operands = 0 : i64, tpu.core_type = #tpu.core_type<tc>, window_params = [{transform_indices = @transform_0, window_bounds = array<i64: 4, 128>}, {pipeline_mode = #tpu.pipeline_mode<synchronous>, transform_indices = @transform_1, window_bounds = array<i64: 128, 128>}, {pipeline_mode = #tpu.pipeline_mode<synchronous>, transform_indices = @transform_2, window_bounds = array<i64: 128, 512>}, {pipeline_mode = #tpu.pipeline_mode<synchronous>, transform_indices = @transform_3, window_bounds = array<i64: 1, 512>}, {pipeline_mode = #tpu.pipeline_mode<synchronous>, transform_indices = @transform_4, window_bounds = array<i64: 512, 128>}, {pipeline_mode = #tpu.pipeline_mode<synchronous>, transform_indices = @transform_5, window_bounds = array<i64: 1, 128>}, {transform_indices = @transform_6, window_bounds = array<i64: 4, 128>}]} {
    %c0 = arith.constant 0 : index
    %c0_0 = arith.constant 0 : index
    %0 = vector.load %arg1[%c0, %c0_0] : memref<4x128xf32, #tpu.memory_space<vmem>>, vector<4x128xf32>
    %c0_1 = arith.constant 0 : index
    %c0_2 = arith.constant 0 : index
    %1 = vector.load %arg2[%c0_1, %c0_2] : memref<128x128xf32, #tpu.memory_space<vmem>>, vector<128x128xf32>
    %cst = arith.constant dense<0.000000e+00> : vector<4x128xf32>
    %2 = tpu.matmul %0, %1, %cst {dimension_numbers = #tpu.dot_dimension_numbers<[1], [0], [0], [1], [0, 0, 1, 1], [], []>} : vector<4x128xf32>, vector<128x128xf32>, vector<4x128xf32> -> vector<4x128xf32>
    %3 = arith.mulf %0, %0 : vector<4x128xf32>
    %cst_3 = arith.constant dense<0.000000e+00> : vector<4x128xf32>
    %4 = tpu.matmul %3, %1, %cst_3 {dimension_numbers = #tpu.dot_dimension_numbers<[1], [0], [0], [1], [0, 0, 1, 1], [], []>} : vector<4x128xf32>, vector<128x128xf32>, vector<4x128xf32> -> vector<4x128xf32>
    %cst_4 = arith.constant 3.125000e-02 : f32
    %5 = vector.broadcast %cst_4 : f32 to vector<4x128xf32>
    %6 = arith.mulf %2, %5 : vector<4x128xf32>
    %cst_5 = arith.constant 3.125000e-02 : f32
    %7 = vector.broadcast %cst_5 : f32 to vector<4x128xf32>
    %8 = arith.mulf %4, %7 : vector<4x128xf32>
    %9 = arith.mulf %6, %6 : vector<4x128xf32>
    %10 = arith.subf %8, %9 : vector<4x128xf32>
    %11 = arith.subf %0, %6 : vector<4x128xf32>
    %cst_6 = arith.constant 9.99999974E-6 : f32
    %12 = vector.broadcast %cst_6 : f32 to vector<4x128xf32>
    %13 = arith.addf %10, %12 : vector<4x128xf32>
    %14 = math.rsqrt %13 : vector<4x128xf32>
    %15 = arith.mulf %11, %14 : vector<4x128xf32>
    %16 = arith.truncf %15 : vector<4x128xf32> to vector<4x128xbf16>
    %c0_7 = arith.constant 0 : index
    %c0_8 = arith.constant 0 : index
    %17 = vector.load %arg3[%c0_7, %c0_8] : memref<128x512xbf16, #tpu.memory_space<vmem>>, vector<128x512xbf16>
    %cst_9 = arith.constant dense<0.000000e+00> : vector<4x512xf32>
    %18 = tpu.matmul %16, %17, %cst_9 {dimension_numbers = #tpu.dot_dimension_numbers<[1], [0], [0], [1], [0, 0, 1, 1], [], []>} : vector<4x128xbf16>, vector<128x512xbf16>, vector<4x512xf32> -> vector<4x512xf32>
    %c0_10 = arith.constant 0 : index
    %c0_11 = arith.constant 0 : index
    %19 = vector.load %arg4[%c0_10, %c0_11] : memref<1x512xf32, #tpu.memory_space<vmem>>, vector<1x512xf32>
    %20 = vector.broadcast %19 : vector<1x512xf32> to vector<4x512xf32>
    %21 = arith.addf %18, %20 : vector<4x512xf32>
    %22 = arith.mulf %21, %21 : vector<4x512xf32>
    %23 = arith.mulf %21, %22 : vector<4x512xf32>
    %cst_12 = arith.constant 4.471500e-02 : f32
    %24 = vector.broadcast %cst_12 : f32 to vector<4x512xf32>
    %25 = arith.mulf %24, %23 : vector<4x512xf32>
    %26 = arith.addf %21, %25 : vector<4x512xf32>
    %cst_13 = arith.constant 0.797884583 : f32
    %27 = vector.broadcast %cst_13 : f32 to vector<4x512xf32>
    %28 = arith.mulf %27, %26 : vector<4x512xf32>
    %29 = math.tanh %28 : vector<4x512xf32>
    %cst_14 = arith.constant 1.000000e+00 : f32
    %30 = vector.broadcast %cst_14 : f32 to vector<4x512xf32>
    %31 = arith.addf %30, %29 : vector<4x512xf32>
    %cst_15 = arith.constant 5.000000e-01 : f32
    %32 = vector.broadcast %cst_15 : f32 to vector<4x512xf32>
    %33 = arith.mulf %32, %31 : vector<4x512xf32>
    %34 = arith.mulf %21, %33 : vector<4x512xf32>
    %35 = arith.truncf %34 : vector<4x512xf32> to vector<4x512xbf16>
    %c0_16 = arith.constant 0 : index
    %c0_17 = arith.constant 0 : index
    %36 = vector.load %arg5[%c0_16, %c0_17] : memref<512x128xbf16, #tpu.memory_space<vmem>>, vector<512x128xbf16>
    %cst_18 = arith.constant dense<0.000000e+00> : vector<4x128xf32>
    %37 = tpu.matmul %35, %36, %cst_18 {dimension_numbers = #tpu.dot_dimension_numbers<[1], [0], [0], [1], [0, 0, 1, 1], [], []>} : vector<4x512xbf16>, vector<512x128xbf16>, vector<4x128xf32> -> vector<4x128xf32>
    %c0_19 = arith.constant 0 : index
    %c0_20 = arith.constant 0 : index
    %38 = vector.load %arg6[%c0_19, %c0_20] : memref<1x128xf32, #tpu.memory_space<vmem>>, vector<1x128xf32>
    %39 = vector.broadcast %38 : vector<1x128xf32> to vector<4x128xf32>
    %40 = arith.addf %37, %39 : vector<4x128xf32>
    %41 = arith.addf %40, %0 : vector<4x128xf32>
    %c0_21 = arith.constant 0 : index
    %c0_22 = arith.constant 0 : index
    %42 = vector.load %arg7[%c0_21, %c0_22] : memref<4x128xf32, #tpu.memory_space<vmem>>, vector<4x128xf32>
    tpu.vector_store %arg7[%c0_21, %c0_22], %41 {strides = array<i32>} : memref<4x128xf32, #tpu.memory_space<vmem>>, vector<4x128xf32>,
    return
  }
  func.func @transform_0(%arg0: i32) -> (i32, i32) {
    %c0_i32 = arith.constant 0 : i32
    %c0_i32_0 = arith.constant 0 : i32
    return %arg0, %c0_i32 : i32, i32
  }
  func.func @transform_1(%arg0: i32) -> (i32, i32) {
    %c0_i32 = arith.constant 0 : i32
    %c0_i32_0 = arith.constant 0 : i32
    %c0_i32_1 = arith.constant 0 : i32
    return %c0_i32, %c0_i32_0 : i32, i32
  }
  func.func @transform_2(%arg0: i32) -> (i32, i32) {
    %c0_i32 = arith.constant 0 : i32
    %c0_i32_0 = arith.constant 0 : i32
    %c0_i32_1 = arith.constant 0 : i32
    return %c0_i32, %c0_i32_0 : i32, i32
  }
  func.func @transform_3(%arg0: i32) -> (i32, i32) {
    %c0_i32 = arith.constant 0 : i32
    %c0_i32_0 = arith.constant 0 : i32
    %c0_i32_1 = arith.constant 0 : i32
    return %c0_i32, %c0_i32_0 : i32, i32
  }
  func.func @transform_4(%arg0: i32) -> (i32, i32) {
    %c0_i32 = arith.constant 0 : i32
    %c0_i32_0 = arith.constant 0 : i32
    %c0_i32_1 = arith.constant 0 : i32
    return %c0_i32, %c0_i32_0 : i32, i32
  }
  func.func @transform_5(%arg0: i32) -> (i32, i32) {
    %c0_i32 = arith.constant 0 : i32
    %c0_i32_0 = arith.constant 0 : i32
    %c0_i32_1 = arith.constant 0 : i32
    return %c0_i32, %c0_i32_0 : i32, i32
  }
  func.func @transform_6(%arg0: i32) -> (i32, i32) {
    %c0_i32 = arith.constant 0 : i32
    %c0_i32_0 = arith.constant 0 : i32
    return %arg0, %c0_i32 : i32, i32
  }
}

</mosaic_0001>

<llo_original>
// kernel: tpu_custom_call.1
$region0: #{tpu_custom_call.1}
  #allocation0 [shape = 'u32[]', space=smem, size = 0x4, offset = 0x4, fixed_abs, tag = 'smem constant byte address 0x4 - core index']
  #allocation1 [shape = 'u32[144,128]{1,0:T(1,128)}', space=vmem, size = 0x12000, scoped, tag = 'internal scratch']
  %s0 = inlined_call_operand.hbm [shape: f32[4,128], index: 0, kind: input, shape index: {}]
  %s1 = inlined_call_operand.hbm [shape: f32[128,128], index: 1, kind: input, shape index: {}]
  %s2 = inlined_call_operand.hbm [shape: bf16[128,512], index: 2, kind: input, shape index: {}]
  %s3 = inlined_call_operand.vmem [shape: f32[1,512], index: 3, kind: input, shape index: {}]
  %s4 = inlined_call_operand.hbm [shape: bf16[512,128], index: 4, kind: input, shape index: {}]
  %s5 = inlined_call_operand.vmem [shape: f32[1,128], index: 5, kind: input, shape index: {}]
  %s6 = inlined_call_operand.hbm [shape: f32[4,128], index: 6, kind: output, shape index: {}]
  %s7 = sld [smem:[#allocation0]]
  $region50: #{tpu_custom_call.1} parent=0
    _
  %s9 = ssub.s32 1, %s7
  %s10 = scalar_select 0, %s9, %s7
  $region1: #{tpu_custom_call.1} parent=0
    #allocation2 [shape = 'u8[2048]{0}', space=vmem, size = 0x800, scoped, tag = 'input window, operand 0, single buffered']
    #allocation3 [shape = 's32[1]{0}', space=sflag, size = 0x4, scoped, tag = 'scoped memory for tpu_custom_call.1']
    #allocation4 [shape = 's32[1]{0}', space=sflag, size = 0x4, scoped, tag = 'scoped memory for tpu_custom_call.1']
    #allocation5 [shape = 'u8[65536]{0}', space=vmem, size = 0x10000, scoped, tag = 'input window, operand 1, single buffered']
    #allocation6 [shape = 's32[1]{0}', space=sflag, size = 0x4, scoped, tag = 'scoped memory for tpu_custom_call.1']
    #allocation7 [shape = 'u8[131072]{0}', space=vmem, size = 0x20000, scoped, tag = 'input window, operand 2, single buffered']
    #allocation8 [shape = 'u8[131072]{0}', space=vmem, size = 0x20000, scoped, tag = 'input window, operand 4, single buffered']
    #allocation9 [shape = 's32[1]{0}', space=sflag, size = 0x4, scoped, tag = 'scoped memory for tpu_custom_call.1']
    #allocation10 [shape = 'u8[2048]{0}', space=vmem, size = 0x800, scoped, tag = 'output window, operand 0, single buffered']
    %11 = vsyncpa [#allocation3], 0
    %12 = vsyncpa [#allocation6], 0
    %13 = vsyncpa [#allocation9], 0
    %14 = vsyncpa [#allocation4], 0
    // Predicated region
    $region2: #{tpu_custom_call.1} parent=1 // pred_check
      _
    $region3: #{tpu_custom_call.1} parent=1 // pred_check_branch
      %16 = sbr.rel (0) target = $region5
    $region4: #{tpu_custom_call.1} parent=1 // pred_region
      %s18 = ssub.s32 64, 64
      %19 = vsyncadd [#allocation3], %s18
      %s21 = sshll.u32 [#allocation2], 4
      %s22 = int_to_ptr.vmem [resolvable:$true] %s21
      %24 = dma.hbm_to_vmem [thread:$0]  %s0, 64, %s22, [#allocation3]
    $region5: #{tpu_custom_call.1} parent=1 // pred_fallthru
      _
    // Predicated region
    $region6: #{tpu_custom_call.1} parent=1 // pred_check
      _
    $region7: #{tpu_custom_call.1} parent=1 // pred_check_branch
      %26 = sbr.rel (0) target = $region9
    $region8: #{tpu_custom_call.1} parent=1 // pred_region
      %s28 = ssub.s32 2048, 2048
      %29 = vsyncadd [#allocation6], %s28
      %s30 = sshll.u32 [#allocation5], 4
      %s31 = int_to_ptr.vmem [resolvable:$true] %s30
      %36 = dma.hbm_to_vmem [thread:$0]  %s1, 2048, %s31, [#allocation6], 128, 128, 8
    $region9: #{tpu_custom_call.1} parent=1 // pred_fallthru
      _
    // Predicated region
    $region10: #{tpu_custom_call.1} parent=1 // pred_check
      _
    $region11: #{tpu_custom_call.1} parent=1 // pred_check_branch
      %38 = sbr.rel (0) target = $region13
    $region12: #{tpu_custom_call.1} parent=1 // pred_region
      %s40 = ssub.s32 4096, 4096
      %41 = vsyncadd [#allocation6], %s40
      %s42 = sshll.u32 [#allocation7], 4
      %s43 = int_to_ptr.vmem [resolvable:$true] %s42
      %48 = dma.hbm_to_vmem [thread:$0]  %s2, 4096, %s43, [#allocation6], 256, 256, 16
    $region13: #{tpu_custom_call.1} parent=1 // pred_fallthru
      _
    // Predicated region
    $region14: #{tpu_custom_call.1} parent=1 // pred_check
      _
    $region15: #{tpu_custom_call.1} parent=1 // pred_check_branch
      %50 = sbr.rel (0) target = $region17
    $region16: #{tpu_custom_call.1} parent=1 // pred_region
      _
    $region17: #{tpu_custom_call.1} parent=1 // pred_fallthru
      _
    // Predicated region
    $region18: #{tpu_custom_call.1} parent=1 // pred_check
      _
    $region19: #{tpu_custom_call.1} parent=1 // pred_check_branch
      %52 = sbr.rel (0) target = $region21
    $region20: #{tpu_custom_call.1} parent=1 // pred_region
      %s54 = ssub.s32 4096, 4096
      %55 = vsyncadd [#allocation9], %s54
      %s56 = sshll.u32 [#allocation8], 4
      %s57 = int_to_ptr.vmem [resolvable:$true] %s56
      %62 = dma.hbm_to_vmem [thread:$0]  %s4, 4096, %s57, [#allocation9], 64, 64, 4
    $region21: #{tpu_custom_call.1} parent=1 // pred_fallthru
      _
    // Predicated region
    $region22: #{tpu_custom_call.1} parent=1 // pred_check
      _
    $region23: #{tpu_custom_call.1} parent=1 // pred_check_branch
      %64 = sbr.rel (0) target = $region25
    $region24: #{tpu_custom_call.1} parent=1 // pred_region
      _
    $region25: #{tpu_custom_call.1} parent=1 // pred_fallthru
      _
    // Predicated region
    $region26: #{tpu_custom_call.1} parent=1 // pred_check
      _
    $region27: #{tpu_custom_call.1} parent=1 // pred_check_branch
      %66 = sbr.rel (0) target = $region29
    $region28: #{tpu_custom_call.1} parent=1 // pred_region
      %67 = dma.done [#allocation3], 64
    $region29: #{tpu_custom_call.1} parent=1 // pred_fallthru
      _
    // Predicated region
    $region30: #{tpu_custom_call.1} parent=1 // pred_check
      _
    $region31: #{tpu_custom_call.1} parent=1 // pred_check_branch
      %69 = sbr.rel (0) target = $region33
    $region32: #{tpu_custom_call.1} parent=1 // pred_region
      %70 = dma.done [#allocation6], 2048
    $region33: #{tpu_custom_call.1} parent=1 // pred_fallthru
      _
    // Predicated region
    $region34: #{tpu_custom_call.1} parent=1 // pred_check
      _
    $region35: #{tpu_custom_call.1} parent=1 // pred_check_branch
      %72 = sbr.rel (0) target = $region37
    $region36: #{tpu_custom_call.1} parent=1 // pred_region
      %73 = dma.done [#allocation6], 4096
    $region37: #{tpu_custom_call.1} parent=1 // pred_fallthru
      _
    // Predicated region
    $region38: #{tpu_custom_call.1} parent=1 // pred_check
      _
    $region39: #{tpu_custom_call.1} parent=1 // pred_check_branch
      %75 = sbr.rel (0) target = $region41
    $region40: #{tpu_custom_call.1} parent=1 // pred_region
      %76 = dma.done [#allocation9], 4096
    $region41: #{tpu_custom_call.1} parent=1 // pred_fallthru
      _
    %v78 = vld [vmem:[#allocation2] sm:$0xf]
    %v79 = vld [vmem:[#allocation5] sm:$0xff]
    %v80 = vld [vmem:[#allocation5 + $0x8] sm:$0xff]
    %v81 = vld [vmem:[#allocation5 + $0x10] sm:$0xff]
    %v82 = vld [vmem:[#allocation5 + $0x18] sm:$0xff]
    %v83 = vld [vmem:[#allocation5 + $0x20] sm:$0xff]
    %v84 = vld [vmem:[#allocation5 + $0x28] sm:$0xff]
    %v85 = vld [vmem:[#allocation5 + $0x30] sm:$0xff]
    %v86 = vld [vmem:[#allocation5 + $0x38] sm:$0xff]
    %v87 = vld [vmem:[#allocation5 + $0x40] sm:$0xff]
    %v88 = vld [vmem:[#allocation5 + $0x48] sm:$0xff]
    %v89 = vld [vmem:[#allocation5 + $0x50] sm:$0xff]
    %v90 = vld [vmem:[#allocation5 + $0x58] sm:$0xff]
    %v91 = vld [vmem:[#allocation5 + $0x60] sm:$0xff]
    %v92 = vld [vmem:[#allocation5 + $0x68] sm:$0xff]
    %v93 = vld [vmem:[#allocation5 + $0x70] sm:$0xff]
    %v94 = vld [vmem:[#allocation5 + $0x78] sm:$0xff]
    %95 = vmatprep.subr.mxu0 0.0
    %96 = vmatpush1.msra.mxu0 %v79
    %97 = vmatprep.subr.mxu0 0.0
    %98 = vmatpush1.msra.mxu0 %v80
    %99 = vmatprep.subr.mxu0 0.0
    %100 = vmatpush1.msra.mxu0 %v81
    %101 = vmatprep.subr.mxu0 0.0
    %102 = vmatpush1.msra.mxu0 %v82
    %103 = vmatprep.subr.mxu0 0.0
    %104 = vmatpush1.msra.mxu0 %v83
    %105 = vmatprep.subr.mxu0 0.0
    %106 = vmatpush1.msra.mxu0 %v84
    %107 = vmatprep.subr.mxu0 0.0
    %108 = vmatpush1.msra.mxu0 %v85
    %109 = vmatprep.subr.mxu0 0.0
    %110 = vmatpush1.msra.mxu0 %v86
    %111 = vmatprep.subr.mxu0 0.0
    %112 = vmatpush1.msra.mxu0 %v87
    %113 = vmatprep.subr.mxu0 0.0
    %114 = vmatpush1.msra.mxu0 %v88
    %115 = vmatprep.subr.mxu0 0.0
    %116 = vmatpush1.msra.mxu0 %v89
    %117 = vmatprep.subr.mxu0 0.0
    %118 = vmatpush1.msra.mxu0 %v90
    %119 = vmatprep.subr.mxu0 0.0
    %120 = vmatpush1.msra.mxu0 %v91
    %121 = vmatprep.subr.mxu0 0.0
    %122 = vmatpush1.msra.mxu0 %v92
    %123 = vmatprep.subr.mxu0 0.0
    %124 = vmatpush1.msra.mxu0 %v93
    %125 = vmatprep.subr.mxu0 0.0
    %126 = vmatpush1.msra.mxu0 %v94
    %127 = vmatprep.subr.mxu0 0.0
    %128 = vmatpush1.msra.mxu0 0.0
    %129 = vmatprep.subr.mxu0 0.0
    %130 = vmatpush1.msra.mxu0 0.0
    %131 = vmatprep.subr.mxu0 0.0
    %132 = vmatpush1.msra.mxu0 0.0
    %133 = vmatprep.subr.mxu0 0.0
    %134 = vmatpush1.msra.mxu0 0.0
    %135 = vmatprep.subr.mxu0 0.0
    %136 = vmatpush1.msra.mxu0 0.0
    %137 = vmatprep.subr.mxu0 0.0
    %138 = vmatpush1.msra.mxu0 0.0
    %139 = vmatprep.subr.mxu0 0.0
    %140 = vmatpush1.msra.mxu0 0.0
    %141 = vmatprep.subr.mxu0 0.0
    %142 = vmatpush1.msra.mxu0 0.0
    %143 = vmatprep.subr.mxu0 0.0
    %144 = vmatpush1.msra.mxu0 0.0
    %145 = vmatprep.subr.mxu0 0.0
    %146 = vmatpush1.msra.mxu0 0.0
    %147 = vmatprep.subr.mxu0 0.0
    %148 = vmatpush1.msra.mxu0 0.0
    %149 = vmatprep.subr.mxu0 0.0
    %150 = vmatpush1.msra.mxu0 0.0
    %151 = vmatprep.subr.mxu0 0.0
    %152 = vmatpush1.msra.mxu0 0.0
    %153 = vmatprep.subr.mxu0 0.0
    %154 = vmatpush1.msra.mxu0 0.0
    %155 = vmatprep.subr.mxu0 0.0
    %156 = vmatpush1.msra.mxu0 0.0
    %157 = vmatprep.subr.mxu0 0.0
    %158 = vmatpush1.msra.mxu0 0.0
    %159 = vmatprep.mubr.f32.mxu0 0.0
    %160 = vmatmul.mubr.f32.gmra.mrb[0].mxu0 %v78
    %v161 = vpop.f32.mrb[0].mxu0
    %v162 = vadd.f32 0.0, %v161
    %v163 = vpop.f32.mrb[0].mxu0
    %164 = vdwg.mxu0
    %v165 = vmul.f32 %v78, %v78
    %166 = vmatprep.subr.mxu0 0.0
    %167 = vmatpush1.msra.mxu0 %v79
    %168 = vmatprep.subr.mxu0 0.0
    %169 = vmatpush1.msra.mxu0 %v80
    %170 = vmatprep.subr.mxu0 0.0
    %171 = vmatpush1.msra.mxu0 %v81
    %172 = vmatprep.subr.mxu0 0.0
    %173 = vmatpush1.msra.mxu0 %v82
    %174 = vmatprep.subr.mxu0 0.0
    %175 = vmatpush1.msra.mxu0 %v83
    %176 = vmatprep.subr.mxu0 0.0
    %177 = vmatpush1.msra.mxu0 %v84
    %178 = vmatprep.subr.mxu0 0.0
    %179 = vmatpush1.msra.mxu0 %v85
    %180 = vmatprep.subr.mxu0 0.0
    %181 = vmatpush1.msra.mxu0 %v86
    %182 = vmatprep.subr.mxu0 0.0
    %183 = vmatpush1.msra.mxu0 %v87
    %184 = vmatprep.subr.mxu0 0.0
    %185 = vmatpush1.msra.mxu0 %v88
    %186 = vmatprep.subr.mxu0 0.0
    %187 = vmatpush1.msra.mxu0 %v89
    %188 = vmatprep.subr.mxu0 0.0
    %189 = vmatpush1.msra.mxu0 %v90
    %190 = vmatprep.subr.mxu0 0.0
    %191 = vmatpush1.msra.mxu0 %v91
    %192 = vmatprep.subr.mxu0 0.0
    %193 = vmatpush1.msra.mxu0 %v92
    %194 = vmatprep.subr.mxu0 0.0
    %195 = vmatpush1.msra.mxu0 %v93
    %196 = vmatprep.subr.mxu0 0.0
    %197 = vmatpush1.msra.mxu0 %v94
    %198 = vmatprep.subr.mxu0 0.0
    %199 = vmatpush1.msra.mxu0 0.0
    %200 = vmatprep.subr.mxu0 0.0
    %201 = vmatpush1.msra.mxu0 0.0
    %202 = vmatprep.subr.mxu0 0.0
    %203 = vmatpush1.msra.mxu0 0.0
    %204 = vmatprep.subr.mxu0 0.0
    %205 = vmatpush1.msra.mxu0 0.0
    %206 = vmatprep.subr.mxu0 0.0
    %207 = vmatpush1.msra.mxu0 0.0
    %208 = vmatprep.subr.mxu0 0.0
    %209 = vmatpush1.msra.mxu0 0.0
    %210 = vmatprep.subr.mxu0 0.0
    %211 = vmatpush1.msra.mxu0 0.0
    %212 = vmatprep.subr.mxu0 0.0
    %213 = vmatpush1.msra.mxu0 0.0
    %214 = vmatprep.subr.mxu0 0.0
    %215 = vmatpush1.msra.mxu0 0.0
    %216 = vmatprep.subr.mxu0 0.0
    %217 = vmatpush1.msra.mxu0 0.0
    %218 = vmatprep.subr.mxu0 0.0
    %219 = vmatpush1.msra.mxu0 0.0
    %220 = vmatprep.subr.mxu0 0.0
    %221 = vmatpush1.msra.mxu0 0.0
    %222 = vmatprep.subr.mxu0 0.0
    %223 = vmatpush1.msra.mxu0 0.0
    %224 = vmatprep.subr.mxu0 0.0
    %225 = vmatpush1.msra.mxu0 0.0
    %226 = vmatprep.subr.mxu0 0.0
    %227 = vmatpush1.msra.mxu0 0.0
    %228 = vmatprep.subr.mxu0 0.0
    %229 = vmatpush1.msra.mxu0 0.0
    %230 = vmatprep.mubr.f32.mxu0 0.0
    %231 = vmatmul.mubr.f32.gmra.mrb[0].mxu0 %v165
    %v232 = vpop.f32.mrb[0].mxu0
    %v233 = vadd.f32 0.0, %v232
    %v234 = vpop.f32.mrb[0].mxu0
    %235 = vdwg.mxu0
    %v236 = vmul.f32 %v162, 0.03125
    %v237 = vmul.f32 %v233, 0.03125
    %v238 = vmul.f32 %v236, %v236
    %v239 = vsub.f32 %v237, %v238
    %v240 = vsub.f32 %v78, %v236
    %v241 = vadd.f32 %v239, 1e-05
    %v242 = vrsqrt.pop %v241
    %v243 = vmul.f32 %v240, %v242
    %v244 = vpack.c.bf16 %v243, %v243
    %v245 = vld [vmem:[#allocation7] sm:$0xff]
    %v246 = vld [vmem:[#allocation7 + $0x8] sm:$0xff]
    %v247 = vld [vmem:[#allocation7 + $0x10] sm:$0xff]
    %v248 = vld [vmem:[#allocation7 + $0x18] sm:$0xff]
    %v249 = vld [vmem:[#allocation7 + $0x20] sm:$0xff]
    %v250 = vld [vmem:[#allocation7 + $0x28] sm:$0xff]
    %v251 = vld [vmem:[#allocation7 + $0x30] sm:$0xff]
    %v252 = vld [vmem:[#allocation7 + $0x38] sm:$0xff]
    %v253 = vld [vmem:[#allocation7 + $0x40] sm:$0xff]
    %v254 = vld [vmem:[#allocation7 + $0x48] sm:$0xff]
    %v255 = vld [vmem:[#allocation7 + $0x50] sm:$0xff]
    %v256 = vld [vmem:[#allocation7 + $0x58] sm:$0xff]
    %v257 = vld [vmem:[#allocation7 + $0x60] sm:$0xff]
    %v258 = vld [vmem:[#allocation7 + $0x68] sm:$0xff]
    %v259 = vld [vmem:[#allocation7 + $0x70] sm:$0xff]
    %v260 = vld [vmem:[#allocation7 + $0x78] sm:$0xff]
    %v261 = vld [vmem:[#allocation7 + $0x80] sm:$0xff]
    %v262 = vld [vmem:[#allocation7 + $0x88] sm:$0xff]
    %v263 = vld [vmem:[#allocation7 + $0x90] sm:$0xff]
    %v264 = vld [vmem:[#allocation7 + $0x98] sm:$0xff]
    %v265 = vld [vmem:[#allocation7 + $0xa0] sm:$0xff]
    %v266 = vld [vmem:[#allocation7 + $0xa8] sm:$0xff]
    %v267 = vld [vmem:[#allocation7 + $0xb0] sm:$0xff]
    %v268 = vld [vmem:[#allocation7 + $0xb8] sm:$0xff]
    %v269 = vld [vmem:[#allocation7 + $0xc0] sm:$0xff]
    %v270 = vld [vmem:[#allocation7 + $0xc8] sm:$0xff]
    %v271 = vld [vmem:[#allocation7 + $0xd0] sm:$0xff]
    %v272 = vld [vmem:[#allocation7 + $0xd8] sm:$0xff]
    %v273 = vld [vmem:[#allocation7 + $0xe0] sm:$0xff]
    %v274 = vld [vmem:[#allocation7 + $0xe8] sm:$0xff]
    %v275 = vld [vmem:[#allocation7 + $0xf0] sm:$0xff]
    %v276 = vld [vmem:[#allocation7 + $0xf8] sm:$0xff]
    %v277 = vld [vmem:[%s3] sm:$0xf]
    %v279 = vlaneseq
    %v280 = vshrl.u32 %v279, 7
    %v281 = vsub.s32 0, %v280
    %v282 = vrot.slane %v277, %v281
    %v283 = vlaneseq
    %v284 = vshrl.u32 %v283, 7
    %v285 = vsub.s32 1, %v284
    %v286 = vrot.slane %v277, %v285
    %v287 = vlaneseq
    %v288 = vshrl.u32 %v287, 7
    %v289 = vsub.s32 2, %v288
    %v290 = vrot.slane %v277, %v289
    %v291 = vlaneseq
    %v292 = vshrl.u32 %v291, 7
    %v293 = vsub.s32 3, %v292
    %v294 = vrot.slane %v277, %v293
    %v331 = vunpack.c.l.b16 %v245
    %v332 = vunpack.c.h.b16 %v245
    %v333 = vunpack.c.l.b16 %v246
    %v334 = vunpack.c.h.b16 %v246
    %v335 = vunpack.c.l.b16 %v247
    %v336 = vunpack.c.h.b16 %v247
    %v337 = vunpack.c.l.b16 %v248
    %v338 = vunpack.c.h.b16 %v248
    %v339 = vunpack.c.l.b16 %v249
    %v340 = vunpack.c.h.b16 %v249
    %v341 = vunpack.c.l.b16 %v250
    %v342 = vunpack.c.h.b16 %v250
    %v343 = vunpack.c.l.b16 %v251
    %v344 = vunpack.c.h.b16 %v251
    %v345 = vunpack.c.l.b16 %v252
    %v346 = vunpack.c.h.b16 %v252
    %v347 = vunpack.c.l.b16 %v253
    %v348 = vunpack.c.h.b16 %v253
    %v349 = vunpack.c.l.b16 %v254
    %v350 = vunpack.c.h.b16 %v254
    %v351 = vunpack.c.l.b16 %v255
    %v352 = vunpack.c.h.b16 %v255
    %v353 = vunpack.c.l.b16 %v256
    %v354 = vunpack.c.h.b16 %v256
    %v355 = vunpack.c.l.b16 %v257
    %v356 = vunpack.c.h.b16 %v257
    %v357 = vunpack.c.l.b16 %v258
    %v358 = vunpack.c.h.b16 %v258
    %v359 = vunpack.c.l.b16 %v259
    %v360 = vunpack.c.h.b16 %v259
    %v361 = vunpack.c.l.b16 %v260
    %v362 = vunpack.c.h.b16 %v260
    %v363 = vunpack.c.l.b16 %v261
    %v364 = vunpack.c.h.b16 %v261
    %v365 = vunpack.c.l.b16 %v262
    %v366 = vunpack.c.h.b16 %v262
    %v367 = vunpack.c.l.b16 %v263
    %v368 = vunpack.c.h.b16 %v263
    %v369 = vunpack.c.l.b16 %v264
    %v370 = vunpack.c.h.b16 %v264
    %v371 = vunpack.c.l.b16 %v265
    %v372 = vunpack.c.h.b16 %v265
    %v373 = vunpack.c.l.b16 %v266
    %v374 = vunpack.c.h.b16 %v266
    %v375 = vunpack.c.l.b16 %v267
    %v376 = vunpack.c.h.b16 %v267
    %v377 = vunpack.c.l.b16 %v268
    %v378 = vunpack.c.h.b16 %v268
    %v379 = vunpack.c.l.b16 %v269
    %v380 = vunpack.c.h.b16 %v269
    %v381 = vunpack.c.l.b16 %v270
    %v382 = vunpack.c.h.b16 %v270
    %v383 = vunpack.c.l.b16 %v271
    %v384 = vunpack.c.h.b16 %v271
    %v385 = vunpack.c.l.b16 %v272
    %v386 = vunpack.c.h.b16 %v272
    %v387 = vunpack.c.l.b16 %v273
    %v388 = vunpack.c.h.b16 %v273
    %v389 = vunpack.c.l.b16 %v274
    %v390 = vunpack.c.h.b16 %v274
    %v391 = vunpack.c.l.b16 %v275
    %v392 = vunpack.c.h.b16 %v275
    %v393 = vunpack.c.l.b16 %v276
    %v394 = vunpack.c.h.b16 %v276
    %v395 = vpack.c.b16 %v335, %v331
    %v396 = vpack.c.b16 %v336, %v332
    %v397 = vpack.c.b16 %v337, %v333
    %v398 = vpack.c.b16 %v338, %v334
    %v399 = vpack.c.b16 %v343, %v339
    %v400 = vpack.c.b16 %v344, %v340
    %v401 = vpack.c.b16 %v345, %v341
    %v402 = vpack.c.b16 %v346, %v342
    %v403 = vpack.c.b16 %v351, %v347
    %v404 = vpack.c.b16 %v352, %v348
    %v405 = vpack.c.b16 %v353, %v349
    %v406 = vpack.c.b16 %v354, %v350
    %v407 = vpack.c.b16 %v359, %v355
    %v408 = vpack.c.b16 %v360, %v356
    %v409 = vpack.c.b16 %v361, %v357
    %v410 = vpack.c.b16 %v362, %v358
    %v411 = vpack.c.b16 %v367, %v363
    %v412 = vpack.c.b16 %v368, %v364
    %v413 = vpack.c.b16 %v369, %v365
    %v414 = vpack.c.b16 %v370, %v366
    %v415 = vpack.c.b16 %v375, %v371
    %v416 = vpack.c.b16 %v376, %v372
    %v417 = vpack.c.b16 %v377, %v373
    %v418 = vpack.c.b16 %v378, %v374
    %v419 = vpack.c.b16 %v383, %v379
    %v420 = vpack.c.b16 %v384, %v380
    %v421 = vpack.c.b16 %v385, %v381
    %v422 = vpack.c.b16 %v386, %v382
    %v423 = vpack.c.b16 %v391, %v387
    %v424 = vpack.c.b16 %v392, %v388
    %v425 = vpack.c.b16 %v393, %v389
    %v426 = vpack.c.b16 %v394, %v390
    %459 = vmatprep.subr.bf16.mxu0 %v396
    %460 = vmatpush1.bf16.msra.mxu0 %v395
    %461 = vmatprep.subr.bf16.mxu0 %v400
    %462 = vmatpush1.bf16.msra.mxu0 %v399
    %463 = vmatprep.subr.bf16.mxu0 %v404
    %464 = vmatpush1.bf16.msra.mxu0 %v403
    %465 = vmatprep.subr.bf16.mxu0 %v408
    %466 = vmatpush1.bf16.msra.mxu0 %v407
    %467 = vmatprep.subr.bf16.mxu0 %v412
    %468 = vmatpush1.bf16.msra.mxu0 %v411
    %469 = vmatprep.subr.bf16.mxu0 %v416
    %470 = vmatpush1.bf16.msra.mxu0 %v415
    %471 = vmatprep.subr.bf16.mxu0 %v420
    %472 = vmatpush1.bf16.msra.mxu0 %v419
    %473 = vmatprep.subr.bf16.mxu0 %v424
    %474 = vmatpush1.bf16.msra.mxu0 %v423
    %475 = vmatprep.subr.bf16.mxu0 0
    %476 = vmatpush1.bf16.msra.mxu0 0
    %477 = vmatprep.subr.bf16.mxu0 0
    %478 = vmatpush1.bf16.msra.mxu0 0
    %479 = vmatprep.subr.bf16.mxu0 0
    %480 = vmatpush1.bf16.msra.mxu0 0
    %481 = vmatprep.subr.bf16.mxu0 0
    %482 = vmatpush1.bf16.msra.mxu0 0
    %483 = vmatprep.subr.bf16.mxu0 0
    %484 = vmatpush1.bf16.msra.mxu0 0
    %485 = vmatprep.subr.bf16.mxu0 0
    %486 = vmatpush1.bf16.msra.mxu0 0
    %487 = vmatprep.subr.bf16.mxu0 0
    %488 = vmatpush1.bf16.msra.mxu0 0
    %489 = vmatprep.subr.bf16.mxu0 0
    %490 = vmatpush1.bf16.msra.mxu0 0
    %491 = vmatprep.mubr.bf16.mxu0 0
    %492 = vmatmul.mubr.bf16.gmra.mrb[0].mxu0 %v244
    %v493 = vpop.f32.mrb[0].mxu0
    %v494 = vadd.f32 %v282, %v493
    %v495 = vpop.f32.mrb[0].mxu0
    %v496 = vadd.f32 %v286, %v495
    %v497 = vpop.f32.mrb[0].mxu0
    %v498 = vpop.f32.mrb[0].mxu0
    %499 = vdwg.mxu0
    %500 = vmatprep.subr.bf16.mxu0 %v398
    %501 = vmatpush1.bf16.msra.mxu0 %v397
    %502 = vmatprep.subr.bf16.mxu0 %v402
    %503 = vmatpush1.bf16.msra.mxu0 %v401
    %504 = vmatprep.subr.bf16.mxu0 %v406
    %505 = vmatpush1.bf16.msra.mxu0 %v405
    %506 = vmatprep.subr.bf16.mxu0 %v410
    %507 = vmatpush1.bf16.msra.mxu0 %v409
    %508 = vmatprep.subr.bf16.mxu0 %v414
    %509 = vmatpush1.bf16.msra.mxu0 %v413
    %510 = vmatprep.subr.bf16.mxu0 %v418
    %511 = vmatpush1.bf16.msra.mxu0 %v417
    %512 = vmatprep.subr.bf16.mxu0 %v422
    %513 = vmatpush1.bf16.msra.mxu0 %v421
    %514 = vmatprep.subr.bf16.mxu0 %v426
    %515 = vmatpush1.bf16.msra.mxu0 %v425
    %516 = vmatprep.subr.bf16.mxu0 0
    %517 = vmatpush1.bf16.msra.mxu0 0
    %518 = vmatprep.subr.bf16.mxu0 0
    %519 = vmatpush1.bf16.msra.mxu0 0
    %520 = vmatprep.subr.bf16.mxu0 0
    %521 = vmatpush1.bf16.msra.mxu0 0
    %522 = vmatprep.subr.bf16.mxu0 0
    %523 = vmatpush1.bf16.msra.mxu0 0
    %524 = vmatprep.subr.bf16.mxu0 0
    %525 = vmatpush1.bf16.msra.mxu0 0
    %526 = vmatprep.subr.bf16.mxu0 0
    %527 = vmatpush1.bf16.msra.mxu0 0
    %528 = vmatprep.subr.bf16.mxu0 0
    %529 = vmatpush1.bf16.msra.mxu0 0
    %530 = vmatprep.subr.bf16.mxu0 0
    %531 = vmatpush1.bf16.msra.mxu0 0
    %532 = vmatprep.mubr.bf16.mxu0 0
    %533 = vmatmul.mubr.bf16.gmra.mrb[0].mxu0 %v244
    %v534 = vpop.f32.mrb[0].mxu0
    %v535 = vadd.f32 %v290, %v534
    %v536 = vpop.f32.mrb[0].mxu0
    %v537 = vadd.f32 %v294, %v536
    %v538 = vpop.f32.mrb[0].mxu0
    %v539 = vpop.f32.mrb[0].mxu0
    %540 = vdwg.mxu0
    %v541 = vmul.f32 %v494, %v494
    %v542 = vmul.f32 %v496, %v496
    %v543 = vmul.f32 %v535, %v535
    %v544 = vmul.f32 %v537, %v537
    %v545 = vmul.f32 %v494, %v541
    %v546 = vmul.f32 %v496, %v542
    %v547 = vmul.f32 %v535, %v543
    %v548 = vmul.f32 %v537, %v544
    %v549 = vmul.f32 %v545, 0.044715
    %v550 = vmul.f32 %v546, 0.044715
    %v551 = vmul.f32 %v547, 0.044715
    %v552 = vmul.f32 %v548, 0.044715
    %v553 = vadd.f32 %v494, %v549
    %v554 = vadd.f32 %v496, %v550
    %v555 = vadd.f32 %v535, %v551
    %v556 = vadd.f32 %v537, %v552
    %v557 = vmul.f32 %v553, 0.7978846
    %v558 = vmul.f32 %v554, 0.7978846
    %v559 = vmul.f32 %v555, 0.7978846
    %v560 = vmul.f32 %v556, 0.7978846
    %v561 = vtanh.pop %v557
    %v562 = vtanh.pop %v558
    %v563 = vtanh.pop %v559
    %v564 = vtanh.pop %v560
    %v565 = vadd.f32 %v561, 1.0
    %v566 = vadd.f32 %v562, 1.0
    %v567 = vadd.f32 %v563, 1.0
    %v568 = vadd.f32 %v564, 1.0
    %v569 = vmul.f32 %v565, 0.5
    %v570 = vmul.f32 %v566, 0.5
    %v571 = vmul.f32 %v567, 0.5
    %v572 = vmul.f32 %v568, 0.5
    %v573 = vmul.f32 %v494, %v569
    %v574 = vmul.f32 %v496, %v570
    %v575 = vmul.f32 %v535, %v571
    %v576 = vmul.f32 %v537, %v572
    %v577 = vpack.c.bf16 %v573, %v573
    %v578 = vpack.c.bf16 %v574, %v574
    %v579 = vpack.c.bf16 %v575, %v575
    %v580 = vpack.c.bf16 %v576, %v576
    %v581 = vld [vmem:[#allocation8] sm:$0xf]
    %v582 = vld [vmem:[#allocation8 + $0x4] sm:$0xf]
    %v583 = vld [vmem:[#allocation8 + $0x8] sm:$0xf]
    %v584 = vld [vmem:[#allocation8 + $0xc] sm:$0xf]
    %v585 = vld [vmem:[#allocation8 + $0x10] sm:$0xf]
    %v586 = vld [vmem:[#allocation8 + $0x14] sm:$0xf]
    %v587 = vld [vmem:[#allocation8 + $0x18] sm:$0xf]
    %v588 = vld [vmem:[#allocation8 + $0x1c] sm:$0xf]
    %v589 = vld [vmem:[#allocation8 + $0x20] sm:$0xf]
    %v590 = vld [vmem:[#allocation8 + $0x24] sm:$0xf]
    %v591 = vld [vmem:[#allocation8 + $0x28] sm:$0xf]
    %v592 = vld [vmem:[#allocation8 + $0x2c] sm:$0xf]
    %v593 = vld [vmem:[#allocation8 + $0x30] sm:$0xf]
    %v594 = vld [vmem:[#allocation8 + $0x34] sm:$0xf]
    %v595 = vld [vmem:[#allocation8 + $0x38] sm:$0xf]
    %v596 = vld [vmem:[#allocation8 + $0x3c] sm:$0xf]
    %v597 = vld [vmem:[#allocation8 + $0x40] sm:$0xf]
    %v598 = vld [vmem:[#allocation8 + $0x44] sm:$0xf]
    %v599 = vld [vmem:[#allocation8 + $0x48] sm:$0xf]
    %v600 = vld [vmem:[#allocation8 + $0x4c] sm:$0xf]
    %v601 = vld [vmem:[#allocation8 + $0x50] sm:$0xf]
    %v602 = vld [vmem:[#allocation8 + $0x54] sm:$0xf]
    %v603 = vld [vmem:[#allocation8 + $0x58] sm:$0xf]
    %v604 = vld [vmem:[#allocation8 + $0x5c] sm:$0xf]
    %v605 = vld [vmem:[#allocation8 + $0x60] sm:$0xf]
    %v606 = vld [vmem:[#allocation8 + $0x64] sm:$0xf]
    %v607 = vld [vmem:[#allocation8 + $0x68] sm:$0xf]
    %v608 = vld [vmem:[#allocation8 + $0x6c] sm:$0xf]
    %v609 = vld [vmem:[#allocation8 + $0x70] sm:$0xf]
    %v610 = vld [vmem:[#allocation8 + $0x74] sm:$0xf]
    %v611 = vld [vmem:[#allocation8 + $0x78] sm:$0xf]
    %v612 = vld [vmem:[#allocation8 + $0x7c] sm:$0xf]
    %v613 = vld [vmem:[#allocation8 + $0x80] sm:$0xf]
    %v614 = vld [vmem:[#allocation8 + $0x84] sm:$0xf]
    %v615 = vld [vmem:[#allocation8 + $0x88] sm:$0xf]
    %v616 = vld [vmem:[#allocation8 + $0x8c] sm:$0xf]
    %v617 = vld [vmem:[#allocation8 + $0x90] sm:$0xf]
    %v618 = vld [vmem:[#allocation8 + $0x94] sm:$0xf]
    %v619 = vld [vmem:[#allocation8 + $0x98] sm:$0xf]
    %v620 = vld [vmem:[#allocation8 + $0x9c] sm:$0xf]
    %v621 = vld [vmem:[#allocation8 + $0xa0] sm:$0xf]
    %v622 = vld [vmem:[#allocation8 + $0xa4] sm:$0xf]
    %v623 = vld [vmem:[#allocation8 + $0xa8] sm:$0xf]
    %v624 = vld [vmem:[#allocation8 + $0xac] sm:$0xf]
    %v625 = vld [vmem:[#allocation8 + $0xb0] sm:$0xf]
    %v626 = vld [vmem:[#allocation8 + $0xb4] sm:$0xf]
    %v627 = vld [vmem:[#allocation8 + $0xb8] sm:$0xf]
    %v628 = vld [vmem:[#allocation8 + $0xbc] sm:$0xf]
    %v629 = vld [vmem:[#allocation8 + $0xc0] sm:$0xf]
    %v630 = vld [vmem:[#allocation8 + $0xc4] sm:$0xf]
    %v631 = vld [vmem:[#allocation8 + $0xc8] sm:$0xf]
    %v632 = vld [vmem:[#allocation8 + $0xcc] sm:$0xf]
    %v633 = vld [vmem:[#allocation8 + $0xd0] sm:$0xf]
    %v634 = vld [vmem:[#allocation8 + $0xd4] sm:$0xf]
    %v635 = vld [vmem:[#allocation8 + $0xd8] sm:$0xf]
    %v636 = vld [vmem:[#allocation8 + $0xdc] sm:$0xf]
    %v637 = vld [vmem:[#allocation8 + $0xe0] sm:$0xf]
    %v638 = vld [vmem:[#allocation8 + $0xe4] sm:$0xf]
    %v639 = vld [vmem:[#allocation8 + $0xe8] sm:$0xf]
    %v640 = vld [vmem:[#allocation8 + $0xec] sm:$0xf]
    %v641 = vld [vmem:[#allocation8 + $0xf0] sm:$0xf]
    %v642 = vld [vmem:[#allocation8 + $0xf4] sm:$0xf]
    %v643 = vld [vmem:[#allocation8 + $0xf8] sm:$0xf]
    %v644 = vld [vmem:[#allocation8 + $0xfc] sm:$0xf]
    %v645 = vld [vmem:[%s5] sm:$0x1]
    %v647 = vlaneseq
    %v648 = vshrl.u32 %v647, 7
    %v649 = vsub.s32 0, %v648
    %v650 = vrot.slane %v645, %v649
    %v716 = vunpack.c.l.b16 %v581
    %v717 = vunpack.c.l.b16 %v582
    %v718 = vunpack.c.l.b16 %v583
    %v719 = vunpack.c.l.b16 %v584
    %v720 = vunpack.c.l.b16 %v585
    %v721 = vunpack.c.l.b16 %v586
    %v722 = vunpack.c.l.b16 %v587
    %v723 = vunpack.c.l.b16 %v588
    %v724 = vunpack.c.l.b16 %v589
    %v725 = vunpack.c.l.b16 %v590
    %v726 = vunpack.c.l.b16 %v591
    %v727 = vunpack.c.l.b16 %v592
    %v728 = vunpack.c.l.b16 %v593
    %v729 = vunpack.c.l.b16 %v594
    %v730 = vunpack.c.l.b16 %v595
    %v731 = vunpack.c.l.b16 %v596
    %v732 = vunpack.c.l.b16 %v597
    %v733 = vunpack.c.l.b16 %v598
    %v734 = vunpack.c.l.b16 %v599
    %v735 = vunpack.c.l.b16 %v600
    %v736 = vunpack.c.l.b16 %v601
    %v737 = vunpack.c.l.b16 %v602
    %v738 = vunpack.c.l.b16 %v603
    %v739 = vunpack.c.l.b16 %v604
    %v740 = vunpack.c.l.b16 %v605
    %v741 = vunpack.c.l.b16 %v606
    %v742 = vunpack.c.l.b16 %v607
    %v743 = vunpack.c.l.b16 %v608
    %v744 = vunpack.c.l.b16 %v609
    %v745 = vunpack.c.l.b16 %v610
    %v746 = vunpack.c.l.b16 %v611
    %v747 = vunpack.c.l.b16 %v612
    %v748 = vunpack.c.l.b16 %v613
    %v749 = vunpack.c.l.b16 %v614
    %v750 = vunpack.c.l.b16 %v615
    %v751 = vunpack.c.l.b16 %v616
    %v752 = vunpack.c.l.b16 %v617
    %v753 = vunpack.c.l.b16 %v618
    %v754 = vunpack.c.l.b16 %v619
    %v755 = vunpack.c.l.b16 %v620
    %v756 = vunpack.c.l.b16 %v621
    %v757 = vunpack.c.l.b16 %v622
    %v758 = vunpack.c.l.b16 %v623
    %v759 = vunpack.c.l.b16 %v624
    %v760 = vunpack.c.l.b16 %v625
    %v761 = vunpack.c.l.b16 %v626
    %v762 = vunpack.c.l.b16 %v627
    %v763 = vunpack.c.l.b16 %v628
    %v764 = vunpack.c.l.b16 %v629
    %v765 = vunpack.c.l.b16 %v630
    %v766 = vunpack.c.l.b16 %v631
    %v767 = vunpack.c.l.b16 %v632
    %v768 = vunpack.c.l.b16 %v633
    %v769 = vunpack.c.l.b16 %v634
    %v770 = vunpack.c.l.b16 %v635
    %v771 = vunpack.c.l.b16 %v636
    %v772 = vunpack.c.l.b16 %v637
    %v773 = vunpack.c.l.b16 %v638
    %v774 = vunpack.c.l.b16 %v639
    %v775 = vunpack.c.l.b16 %v640
    %v776 = vunpack.c.l.b16 %v641
    %v777 = vunpack.c.l.b16 %v642
    %v778 = vunpack.c.l.b16 %v643
    %v779 = vunpack.c.l.b16 %v644
    %v780 = vpack.c.b16 %v717, %v716
    %v781 = vpack.c.b16 %v719, %v718
    %v782 = vpack.c.b16 %v721, %v720
    %v783 = vpack.c.b16 %v723, %v722
    %v784 = vpack.c.b16 %v725, %v724
    %v785 = vpack.c.b16 %v727, %v726
    %v786 = vpack.c.b16 %v729, %v728
    %v787 = vpack.c.b16 %v731, %v730
    %v788 = vpack.c.b16 %v733, %v732
    %v789 = vpack.c.b16 %v735, %v734
    %v790 = vpack.c.b16 %v737, %v736
    %v791 = vpack.c.b16 %v739, %v738
    %v792 = vpack.c.b16 %v741, %v740
    %v793 = vpack.c.b16 %v743, %v742
    %v794 = vpack.c.b16 %v745, %v744
    %v795 = vpack.c.b16 %v747, %v746
    %v796 = vpack.c.b16 %v749, %v748
    %v797 = vpack.c.b16 %v751, %v750
    %v798 = vpack.c.b16 %v753, %v752
    %v799 = vpack.c.b16 %v755, %v754
    %v800 = vpack.c.b16 %v757, %v756
    %v801 = vpack.c.b16 %v759, %v758
    %v802 = vpack.c.b16 %v761, %v760
    %v803 = vpack.c.b16 %v763, %v762
    %v804 = vpack.c.b16 %v765, %v764
    %v805 = vpack.c.b16 %v767, %v766
    %v806 = vpack.c.b16 %v769, %v768
    %v807 = vpack.c.b16 %v771, %v770
    %v808 = vpack.c.b16 %v773, %v772
    %v809 = vpack.c.b16 %v775, %v774
    %v810 = vpack.c.b16 %v777, %v776
    %v811 = vpack.c.b16 %v779, %v778
    %844 = vmatprep.subr.bf16.mxu0 0
    %845 = vmatpush1.bf16.msra.mxu0 %v780
    %846 = vmatprep.subr.bf16.mxu0 0
    %847 = vmatpush1.bf16.msra.mxu0 %v781
    %848 = vmatprep.subr.bf16.mxu0 0
    %849 = vmatpush1.bf16.msra.mxu0 %v782
    %850 = vmatprep.subr.bf16.mxu0 0
    %851 = vmatpush1.bf16.msra.mxu0 %v783
    %852 = vmatprep.subr.bf16.mxu0 0
    %853 = vmatpush1.bf16.msra.mxu0 %v784
    %854 = vmatprep.subr.bf16.mxu0 0
    %855 = vmatpush1.bf16.msra.mxu0 %v785
    %856 = vmatprep.subr.bf16.mxu0 0
    %857 = vmatpush1.bf16.msra.mxu0 %v786
    %858 = vmatprep.subr.bf16.mxu0 0
    %859 = vmatpush1.bf16.msra.mxu0 %v787
    %860 = vmatprep.subr.bf16.mxu0 0
    %861 = vmatpush1.bf16.msra.mxu0 %v788
    %862 = vmatprep.subr.bf16.mxu0 0
    %863 = vmatpush1.bf16.msra.mxu0 %v789
    %864 = vmatprep.subr.bf16.mxu0 0
    %865 = vmatpush1.bf16.msra.mxu0 %v790
    %866 = vmatprep.subr.bf16.mxu0 0
    %867 = vmatpush1.bf16.msra.mxu0 %v791
    %868 = vmatprep.subr.bf16.mxu0 0
    %869 = vmatpush1.bf16.msra.mxu0 %v792
    %870 = vmatprep.subr.bf16.mxu0 0
    %871 = vmatpush1.bf16.msra.mxu0 %v793
    %872 = vmatprep.subr.bf16.mxu0 0
    %873 = vmatpush1.bf16.msra.mxu0 %v794
    %874 = vmatprep.subr.bf16.mxu0 0
    %875 = vmatpush1.bf16.msra.mxu0 %v795
    %876 = vmatprep.mubr.bf16.mxu0 %v578
    %877 = vmatmul.mubr.bf16.gmra.mrb[0].mxu0 %v577
    %v878 = vpop.f32.mrb[0].mxu0
    %v879 = vadd.f32 %v650, %v878
    %v880 = vpop.f32.mrb[0].mxu0
    %v881 = vpop.f32.mrb[0].mxu0
    %v882 = vpop.f32.mrb[0].mxu0
    %883 = vdwg.mxu0
    %884 = vmatprep.subr.bf16.mxu0 0
    %885 = vmatpush1.bf16.msra.mxu0 %v796
    %886 = vmatprep.subr.bf16.mxu0 0
    %887 = vmatpush1.bf16.msra.mxu0 %v797
    %888 = vmatprep.subr.bf16.mxu0 0
    %889 = vmatpush1.bf16.msra.mxu0 %v798
    %890 = vmatprep.subr.bf16.mxu0 0
    %891 = vmatpush1.bf16.msra.mxu0 %v799
    %892 = vmatprep.subr.bf16.mxu0 0
    %893 = vmatpush1.bf16.msra.mxu0 %v800
    %894 = vmatprep.subr.bf16.mxu0 0
    %895 = vmatpush1.bf16.msra.mxu0 %v801
    %896 = vmatprep.subr.bf16.mxu0 0
    %897 = vmatpush1.bf16.msra.mxu0 %v802
    %898 = vmatprep.subr.bf16.mxu0 0
    %899 = vmatpush1.bf16.msra.mxu0 %v803
    %900 = vmatprep.subr.bf16.mxu0 0
    %901 = vmatpush1.bf16.msra.mxu0 %v804
    %902 = vmatprep.subr.bf16.mxu0 0
    %903 = vmatpush1.bf16.msra.mxu0 %v805
    %904 = vmatprep.subr.bf16.mxu0 0
    %905 = vmatpush1.bf16.msra.mxu0 %v806
    %906 = vmatprep.subr.bf16.mxu0 0
    %907 = vmatpush1.bf16.msra.mxu0 %v807
    %908 = vmatprep.subr.bf16.mxu0 0
    %909 = vmatpush1.bf16.msra.mxu0 %v808
    %910 = vmatprep.subr.bf16.mxu0 0
    %911 = vmatpush1.bf16.msra.mxu0 %v809
    %912 = vmatprep.subr.bf16.mxu0 0
    %913 = vmatpush1.bf16.msra.mxu0 %v810
    %914 = vmatprep.subr.bf16.mxu0 0
    %915 = vmatpush1.bf16.msra.mxu0 %v811
    %916 = vmatprep.mubr.bf16.mxu0 %v580
    %917 = vmatmul.mubr.bf16.gmra.mrb[0].mxu0 %v579
    %v918 = vpop.f32.mrb[0].mxu0
    %v919 = vadd.f32 %v879, %v918
    %v920 = vpop.f32.mrb[0].mxu0
    %v921 = vpop.f32.mrb[0].mxu0
    %v922 = vpop.f32.mrb[0].mxu0
    %923 = vdwg.mxu0
    %v924 = vadd.f32 %v919, %v78
    %925 = vst [vmem:[#allocation10] sm:$0xf] %v924
    // Predicated region
    $region42: #{tpu_custom_call.1} parent=1 // pred_check
      _
    $region43: #{tpu_custom_call.1} parent=1 // pred_check_branch
      %927 = sbr.rel (0) target = $region45
    $region44: #{tpu_custom_call.1} parent=1 // pred_region
      %s929 = ssub.s32 64, 64
      %930 = vsyncadd [#allocation4], %s929
      %s932 = sshll.u32 [#allocation10], 4
      %s933 = int_to_ptr.vmem [resolvable:$true] %s932
      %935 = dma.vmem_to_hbm [thread:$0]  %s933, 64, %s6, [#allocation4]
    $region45: #{tpu_custom_call.1} parent=1 // pred_fallthru
      _
    // Predicated region
    $region46: #{tpu_custom_call.1} parent=1 // pred_check
      _
    $region47: #{tpu_custom_call.1} parent=1 // pred_check_branch
      %937 = sbr.rel (0) target = $region49
    $region48: #{tpu_custom_call.1} parent=1 // pred_region
      %938 = dma.done [#allocation4], 64
    $region49: #{tpu_custom_call.1} parent=1 // pred_fallthru
      _
    %939 = vsyncpa [#allocation3], 1
    %940 = vsyncpa [#allocation6], 1
    %941 = vsyncpa [#allocation9], 1
    %942 = vsyncpa [#allocation4], 1

</llo_original>
